<compile_context>
chip_gen: v7x
topology: tpu7x:2x2x1
jax: 0.10.0
libtpu: 0.0.40
codegen_flags: <defaults>
</compile_context>

<pallas_src>
import functools
import math

import jax
import jax.numpy as jnp
from jax import lax
from jax.experimental import pallas as pl
from jax.experimental.pallas import tpu as pltpu


def _nt_xent_kernel(q_ref, k_ref, loss_ref, denom_acc, pos_acc, *,
                    inv_temp, eps_scaled, half, batch, tm, tn, pos_local_diag):
    i = pl.program_id(0)          # query-row tile (parallel)
    j = pl.program_id(1)          # key-column tile (reduction axis, arbitrary)
    nj = pl.num_programs(1)

    @pl.when(j == 0)
    def _():
        denom_acc[...] = jnp.zeros_like(denom_acc)
        pos_acc[...] = jnp.zeros_like(pos_acc)

    # Rows are pre-normalized and pre-scaled by sqrt(1/T) in the wrapper, so a
    # single MXU contraction yields the already-temperature-scaled similarity.
    s = lax.dot_general(q_ref[...], k_ref[...],
                        dimension_numbers=(((1,), (1,)), ((), ())),
                        preferred_element_type=jnp.float32)      # (tm, tn)

    # exp shifted by the exact row max (cos-sim <= 1  =>  s <= 1/T), so this
    # never overflows even for tiny temperatures.
    p = jnp.exp(s - inv_temp)

    # ---- positive logit -------------------------------------------------
    if pos_local_diag:
        # Positives of row tile i sit on the LOCAL diagonal of exactly one
        # column tile; every other tile skips the iota/select/reduce.
        pos_j = (i + (half // tm)) % nj

        @pl.when(j == pos_j)
        def _():
            r = lax.broadcasted_iota(jnp.int32, (tm, tn), 0)
            c = lax.broadcasted_iota(jnp.int32, (tm, tn), 1)
            pos_acc[...] += jnp.sum(jnp.where(r == c, s, 0.0),
                                    axis=1, keepdims=True)
    else:
        # Fallback (tiny grids / half not tile-aligned): exact global indices.
        row_g = i * tm + lax.broadcasted_iota(jnp.int32, (tm, tn), 0)
        col_g = j * tn + lax.broadcasted_iota(jnp.int32, (tm, tn), 1)
        pos_mask = col_g == lax.rem(row_g + half, batch)
        pos_acc[...] += jnp.sum(jnp.where(pos_mask, s, 0.0),
                                axis=1, keepdims=True)

    # ---- off-diagonal denominator ---------------------------------------
    # With square tiles the self-similarity diagonal only intersects i == j.
    @pl.when(i == j)
    def _():
        r = lax.broadcasted_iota(jnp.int32, (tm, tn), 0)
        c = lax.broadcasted_iota(jnp.int32, (tm, tn), 1)
        denom_acc[...] += jnp.sum(jnp.where(r == c, 0.0, p),
                                  axis=1, keepdims=True)

    @pl.when(i != j)
    def _():
        denom_acc[...] += jnp.sum(p, axis=1, keepdims=True)

    # ---- finalize --------------------------------------------------------
    @pl.when(j == nj - 1)
    def _():
        # loss_i = -log(exp(sim_pos)/(denom + eps))
        #        = 1/T + log(denom_shifted + eps*exp(-1/T)) - sim_pos   (exact)
        loss_ref[...] = (inv_temp + jnp.log(denom_acc[...] + eps_scaled)
                         - pos_acc[...]).astype(loss_ref.dtype)


def _pick_tile(batch: int, d_pad: int, itemsize: int, vmem_budget: int) -> int:
    """Square tile: divisor of batch, MXU-aligned if possible, VMEM-derated,
    and keeping >= 2 row tiles when possible (v7x megacore sharding)."""
    cands = [t for t in range(8, batch + 1, 8) if batch % t == 0]
    if not cands:
        cands = [batch]                      # full-dim block is always legal

    def fits(t):
        dma = 2 * 2 * t * d_pad * itemsize   # double-buffered q & k blocks
        temps = 6 * t * t * 4                # sim/exp/select f32 temporaries
        return dma + temps <= vmem_budget

    fitting = [t for t in cands if fits(t)] or [min(cands)]

    def score(t):
        multi_row_tiles = 1 if batch // t >= 2 else 0          # megacore
        mxu_align = 2 if t % 256 == 0 else (1 if t % 128 == 0 else 0)
        return (multi_row_tiles, mxu_align, t)

    return max(fitting, key=score)


def nt_xent_loss(z_all: jax.Array, temperature: float, *,
                 tile: int | None = None,
                 use_bf16_matmul: bool = True) -> jax.Array:
    """Pallas TPU implementation of NT_Xent_Loss.forward. Returns a scalar."""
    B, D = z_all.shape
    assert B % 2 == 0, "batch_size_effective must be even (two augmented views)"
    half = B // 2
    inv_temp = 1.0 / float(temperature)

    # ---- prologue (plain XLA, runs once): normalize + fold sqrt(1/T) -------
    # F.normalize(x, dim=1): x / max(||x||, 1e-12)
    z = z_all.astype(jnp.float32)
    z = z * lax.rsqrt(jnp.maximum(jnp.sum(z * z, axis=1, keepdims=True), 1e-24))
    z = z * jnp.float32(math.sqrt(inv_temp))
    if use_bf16_matmul:
        z = z.astype(jnp.bfloat16)

    # Lane-dense features: zero-pad D to a multiple of 128 (does not change
    # dot products).
    d_pad = -(-D // 128) * 128
    if d_pad != D:
        z = jnp.pad(z, ((0, 0), (0, d_pad - D)))

    # ---- generation-aware VMEM budget & tile selection ----------------------
    try:
        vmem_cap = pltpu.get_tpu_info().vmem_capacity_bytes
    except Exception:
        vmem_cap = 64 * 1024 * 1024          # conservative (v7x per-core size)
    vmem_limit = min(int(vmem_cap * 0.75), 100 * 1024 * 1024)

    if tile is None:
        tile = _pick_tile(B, d_pad, z.dtype.itemsize, int(vmem_limit * 0.6))
    assert B % tile == 0, "tile size must divide the batch"
    tm = tn = tile
    pos_local_diag = (half % tm == 0)        # positives live on one tile's diag

    kernel = functools.partial(
        _nt_xent_kernel,
        inv_temp=inv_temp,
        eps_scaled=1e-8 * math.exp(-inv_temp),
        half=half, batch=B, tm=tm, tn=tn,
        pos_local_diag=pos_local_diag)

    per_row_loss = pl.pallas_call(
        kernel,
        out_shape=jax.ShapeDtypeStruct((B, 1), jnp.float32),
        grid_spec=pltpu.PrefetchScalarGridSpec(
            num_scalar_prefetch=0,
            grid=(B // tm, B // tn),
            in_specs=[
                pl.BlockSpec((tm, d_pad), lambda i, j: (i, 0)),   # query rows
                pl.BlockSpec((tn, d_pad), lambda i, j: (j, 0)),   # key rows
            ],
            out_specs=pl.BlockSpec((tm, 1), lambda i, j: (i, 0)),
            scratch_shapes=[pltpu.VMEM((tm, 1), jnp.float32),     # denom acc
                            pltpu.VMEM((tm, 1), jnp.float32)],    # pos-logit acc
        ),
        compiler_params=pltpu.CompilerParams(
            dimension_semantics=("parallel", "arbitrary"),
            vmem_limit_bytes=vmem_limit),
    )(z, z)

    # Final mean over B rows: trivial reduction, done outside the kernel.
    return jnp.mean(per_row_loss[:, 0])


def _reference_nt_xent(z_all, temperature):
    """Plain-JAX reference mirroring the PyTorch module, for sanity checking."""
    B = z_all.shape[0]
    half = B // 2
    norm = jnp.maximum(jnp.linalg.norm(z_all, axis=1, keepdims=True), 1e-12)
    z_n = z_all / norm
    sim = jnp.einsum("id,jd->ij", z_n, z_n,
                     precision=lax.Precision.HIGHEST) / temperature
    pos_idx = jnp.concatenate([jnp.arange(half, B), jnp.arange(0, half)])
    sim_pos = sim[jnp.arange(B), pos_idx]
    numerator = jnp.exp(sim_pos)
    mask = ~jnp.eye(B, dtype=bool)
    denominator = jnp.sum(jnp.exp(sim) * mask, axis=1)
    return jnp.mean(-jnp.log(numerator / (denominator + 1e-8)))


if __name__ == "__main__":
    temperature = 0.5

    # Small shape consistent with the module (two augmented views per example).
    B, D = 8, 32
    z = jax.random.normal(jax.random.PRNGKey(0), (B, D), dtype=jnp.float32)
    ref = _reference_nt_xent(z, temperature)

    loss_bf16 = jax.block_until_ready(nt_xent_loss(z, temperature))   # bf16 MXU default
    assert jnp.allclose(loss_bf16, ref, rtol=2e-2, atol=2e-2), (loss_bf16, ref)

    loss_f32 = jax.block_until_ready(
        nt_xent_loss(z, temperature, use_bf16_matmul=False))          # accurate path
    assert jnp.allclose(loss_f32, ref, rtol=1e-4, atol=1e-4), (loss_f32, ref)

    # Larger case exercising the (row, col) grid, pl.when gating and online
    # accumulation (auto-picked square 128 tiles -> 2x2 grid).
    B2, D2 = 256, 128
    z2 = jax.random.normal(jax.random.PRNGKey(1), (B2, D2), dtype=jnp.float32)
    ref2 = _reference_nt_xent(z2, temperature)

    loss2_bf16 = jax.block_until_ready(nt_xent_loss(z2, temperature))
    assert jnp.allclose(loss2_bf16, ref2, rtol=2e-2, atol=2e-2), (loss2_bf16, ref2)

    loss2_f32 = jax.block_until_ready(
        nt_xent_loss(z2, temperature, use_bf16_matmul=False))
    assert jnp.allclose(loss2_f32, ref2, rtol=1e-4, atol=1e-4), (loss2_f32, ref2)

    print("KERNEL_OK")
</pallas_src>

<mosaic_0001>
module attributes {stable_mosaic.version = 11 : i64} {
  func.func @_nt_xent_kernel(%arg0: i32, %arg1: i32, %arg2: memref<8x128xbf16, #tpu.memory_space<vmem>>, %arg3: memref<8x128xbf16, #tpu.memory_space<vmem>>, %arg4: memref<8x1xf32, #tpu.memory_space<vmem>>, %arg5: memref<8x1xf32, #tpu.memory_space<vmem>>, %arg6: memref<8x1xf32, #tpu.memory_space<vmem>>) attributes {dimension_semantics = [#tpu.dimension_semantics<parallel>, #tpu.dimension_semantics<arbitrary>], iteration_bounds = array<i64: 1, 1>, scalar_prefetch = 0 : i64, scratch_operands = 2 : i64, tpu.core_type = #tpu.core_type<tc>, window_params = [{transform_indices = @transform_0, window_bounds = array<i64: 8, 128>}, {transform_indices = @transform_1, window_bounds = array<i64: 8, 128>}, {transform_indices = @transform_2, window_bounds = array<i64: 8, 1>}]} {
    %c0_i32 = arith.constant 0 : i32
    %0 = arith.cmpi eq, %arg1, %c0_i32 : i32
    %1 = arith.extui %0 : i1 to i32
    %c0_i32_0 = arith.constant 0 : i32
    %2 = arith.cmpi ne, %1, %c0_i32_0 : i32
    scf.if %2 {
      %cst_17 = arith.constant 0.000000e+00 : f32
      %38 = vector.broadcast %cst_17 : f32 to vector<8x1xf32>
      %c0_18 = arith.constant 0 : index
      %c0_19 = arith.constant 0 : index
      %39 = vector.load %arg5[%c0_18, %c0_19] : memref<8x1xf32, #tpu.memory_space<vmem>>, vector<8x1xf32>
      tpu.vector_store %arg5[%c0_18, %c0_19], %38 {strides = array<i32>} : memref<8x1xf32, #tpu.memory_space<vmem>>, vector<8x1xf32>,
      %cst_20 = arith.constant 0.000000e+00 : f32
      %40 = vector.broadcast %cst_20 : f32 to vector<8x1xf32>
      %c0_21 = arith.constant 0 : index
      %c0_22 = arith.constant 0 : index
      %41 = vector.load %arg6[%c0_21, %c0_22] : memref<8x1xf32, #tpu.memory_space<vmem>>, vector<8x1xf32>
      tpu.vector_store %arg6[%c0_21, %c0_22], %40 {strides = array<i32>} : memref<8x1xf32, #tpu.memory_space<vmem>>, vector<8x1xf32>,
    } else {
    }
    %c0 = arith.constant 0 : index
    %c0_1 = arith.constant 0 : index
    %3 = vector.load %arg2[%c0, %c0_1] : memref<8x128xbf16, #tpu.memory_space<vmem>>, vector<8x128xbf16>
    %c0_2 = arith.constant 0 : index
    %c0_3 = arith.constant 0 : index
    %4 = vector.load %arg3[%c0_2, %c0_3] : memref<8x128xbf16, #tpu.memory_space<vmem>>, vector<8x128xbf16>
    %cst = arith.constant dense<0.000000e+00> : vector<8x8xf32>
    %5 = tpu.matmul %3, %4, %cst {dimension_numbers = #tpu.dot_dimension_numbers<[1], [1], [0], [0], [0, 0, 1, 0], [], []>} : vector<8x128xbf16>, vector<8x128xbf16>, vector<8x8xf32> -> vector<8x8xf32>
    %cst_4 = arith.constant 2.000000e+00 : f32
    %6 = vector.broadcast %cst_4 : f32 to vector<8x8xf32>
    %7 = arith.subf %5, %6 : vector<8x8xf32>
    %8 = math.exp %7 : vector<8x8xf32>
    %c8_i32 = arith.constant 8 : i32
    %9 = arith.muli %arg0, %c8_i32 : i32
    %10 = tpu.iota {dimensions = array<i32: 0>} : vector<8x8xi32>
    %11 = vector.broadcast %9 : i32 to vector<8x8xi32>
    %12 = arith.addi %11, %10 : vector<8x8xi32>
    %c8_i32_5 = arith.constant 8 : i32
    %13 = arith.muli %arg1, %c8_i32_5 : i32
    %14 = tpu.iota {dimensions = array<i32: 1>} : vector<8x8xi32>
    %15 = vector.broadcast %13 : i32 to vector<8x8xi32>
    %16 = arith.addi %15, %14 : vector<8x8xi32>
    %c4_i32 = arith.constant 4 : i32
    %17 = vector.broadcast %c4_i32 : i32 to vector<8x8xi32>
    %18 = arith.addi %12, %17 : vector<8x8xi32>
    %c8_i32_6 = arith.constant 8 : i32
    %19 = vector.broadcast %c8_i32_6 : i32 to vector<8x8xi32>
    %20 = arith.remsi %18, %19 : vector<8x8xi32>
    %21 = arith.cmpi eq, %16, %20 : vector<8x8xi32>
    %c0_7 = arith.constant 0 : index
    %c0_8 = arith.constant 0 : index
    %22 = vector.load %arg6[%c0_7, %c0_8] : memref<8x1xf32, #tpu.memory_space<vmem>>, vector<8x1xf32>
    %cst_9 = arith.constant 0.000000e+00 : f32
    %23 = vector.broadcast %cst_9 : f32 to vector<8x8xf32>
    %24 = arith.select %21, %5, %23 : vector<8x8xi1>, vector<8x8xf32>
    %cst_10 = arith.constant dense<0.000000e+00> : vector<8xf32>
    %25 = vector.multi_reduction <add>, %24, %cst_10 [1] : vector<8x8xf32> to vector<8xf32>
    %26 = vector.shape_cast %25 : vector<8xf32> to vector<8x1xf32>
    %27 = arith.addf %22, %26 : vector<8x1xf32>
    %c0_11 = arith.constant 0 : index
    %c0_12 = arith.constant 0 : index
    %28 = vector.load %arg6[%c0_11, %c0_12] : memref<8x1xf32, #tpu.memory_space<vmem>>, vector<8x1xf32>
    tpu.vector_store %arg6[%c0_11, %c0_12], %27 {strides = array<i32>} : memref<8x1xf32, #tpu.memory_space<vmem>>, vector<8x1xf32>,
    %29 = arith.cmpi eq, %arg0, %arg1 : i32
    %30 = arith.extui %29 : i1 to i32
    %c0_i32_13 = arith.constant 0 : i32
    %31 = arith.cmpi ne, %30, %c0_i32_13 : i32
    scf.if %31 {
      %38 = tpu.iota {dimensions = array<i32: 0>} : vector<8x8xi32>
      %39 = tpu.iota {dimensions = array<i32: 1>} : vector<8x8xi32>
      %c0_17 = arith.constant 0 : index
      %c0_18 = arith.constant 0 : index
      %40 = vector.load %arg5[%c0_17, %c0_18] : memref<8x1xf32, #tpu.memory_space<vmem>>, vector<8x1xf32>
      %41 = arith.cmpi eq, %38, %39 : vector<8x8xi32>
      %cst_19 = arith.constant 0.000000e+00 : f32
      %42 = vector.broadcast %cst_19 : f32 to vector<8x8xf32>
      %43 = arith.select %41, %42, %8 : vector<8x8xi1>, vector<8x8xf32>
      %cst_20 = arith.constant dense<0.000000e+00> : vector<8xf32>
      %44 = vector.multi_reduction <add>, %43, %cst_20 [1] : vector<8x8xf32> to vector<8xf32>
      %45 = vector.shape_cast %44 : vector<8xf32> to vector<8x1xf32>
      %46 = arith.addf %40, %45 : vector<8x1xf32>
      %c0_21 = arith.constant 0 : index
      %c0_22 = arith.constant 0 : index
      %47 = vector.load %arg5[%c0_21, %c0_22] : memref<8x1xf32, #tpu.memory_space<vmem>>, vector<8x1xf32>
      tpu.vector_store %arg5[%c0_21, %c0_22], %46 {strides = array<i32>} : memref<8x1xf32, #tpu.memory_space<vmem>>, vector<8x1xf32>,
    } else {
    }
    %32 = arith.cmpi ne, %arg0, %arg1 : i32
    %33 = arith.extui %32 : i1 to i32
    %c0_i32_14 = arith.constant 0 : i32
    %34 = arith.cmpi ne, %33, %c0_i32_14 : i32
    scf.if %34 {
      %c0_17 = arith.constant 0 : index
      %c0_18 = arith.constant 0 : index
      %38 = vector.load %arg5[%c0_17, %c0_18] : memref<8x1xf32, #tpu.memory_space<vmem>>, vector<8x1xf32>
      %cst_19 = arith.constant dense<0.000000e+00> : vector<8xf32>
      %39 = vector.multi_reduction <add>, %8, %cst_19 [1] : vector<8x8xf32> to vector<8xf32>
      %40 = vector.shape_cast %39 : vector<8xf32> to vector<8x1xf32>
      %41 = arith.addf %38, %40 : vector<8x1xf32>
      %c0_20 = arith.constant 0 : index
      %c0_21 = arith.constant 0 : index
      %42 = vector.load %arg5[%c0_20, %c0_21] : memref<8x1xf32, #tpu.memory_space<vmem>>, vector<8x1xf32>
      tpu.vector_store %arg5[%c0_20, %c0_21], %41 {strides = array<i32>} : memref<8x1xf32, #tpu.memory_space<vmem>>, vector<8x1xf32>,
    } else {
    }
    %c0_i32_15 = arith.constant 0 : i32
    %35 = arith.cmpi eq, %arg1, %c0_i32_15 : i32
    %36 = arith.extui %35 : i1 to i32
    %c0_i32_16 = arith.constant 0 : i32
    %37 = arith.cmpi ne, %36, %c0_i32_16 : i32
    scf.if %37 {
      %c0_17 = arith.constant 0 : index
      %c0_18 = arith.constant 0 : index
      %38 = vector.load %arg5[%c0_17, %c0_18] : memref<8x1xf32, #tpu.memory_space<vmem>>, vector<8x1xf32>
      %cst_19 = arith.constant 1.35335287E-9 : f32
      %39 = vector.broadcast %cst_19 : f32 to vector<8x1xf32>
      %40 = arith.addf %38, %39 : vector<8x1xf32>
      %41 = math.log %40 : vector<8x1xf32>
      %cst_20 = arith.constant 2.000000e+00 : f32
      %42 = vector.broadcast %cst_20 : f32 to vector<8x1xf32>
      %43 = arith.addf %42, %41 : vector<8x1xf32>
      %c0_21 = arith.constant 0 : index
      %c0_22 = arith.constant 0 : index
      %44 = vector.load %arg6[%c0_21, %c0_22] : memref<8x1xf32, #tpu.memory_space<vmem>>, vector<8x1xf32>
      %45 = arith.subf %43, %44 : vector<8x1xf32>
      %c0_23 = arith.constant 0 : index
      %c0_24 = arith.constant 0 : index
      %46 = vector.load %arg4[%c0_23, %c0_24] : memref<8x1xf32, #tpu.memory_space<vmem>>, vector<8x1xf32>
      tpu.vector_store %arg4[%c0_23, %c0_24], %45 {strides = array<i32>} : memref<8x1xf32, #tpu.memory_space<vmem>>, vector<8x1xf32>,
    } else {
    }
    return
  }
  func.func @transform_0(%arg0: i32, %arg1: i32) -> (i32, i32) {
    %c0_i32 = arith.constant 0 : i32
    %c0_i32_0 = arith.constant 0 : i32
    return %arg0, %c0_i32 : i32, i32
  }
  func.func @transform_1(%arg0: i32, %arg1: i32) -> (i32, i32) {
    %c0_i32 = arith.constant 0 : i32
    %c0_i32_0 = arith.constant 0 : i32
    return %arg1, %c0_i32 : i32, i32
  }
  func.func @transform_2(%arg0: i32, %arg1: i32) -> (i32, i32) {
    %c0_i32 = arith.constant 0 : i32
    %c0_i32_0 = arith.constant 0 : i32
    return %arg0, %c0_i32 : i32, i32
  }
}

</mosaic_0001>

<llo_original>
// kernel: tpu_custom_call.1
$region0: #{tpu_custom_call.1}
  #allocation0 [shape = 'u32[]', space=smem, size = 0x4, offset = 0x4, fixed_abs, tag = 'smem constant byte address 0x4 - core index']
  #allocation1 [shape = 'u32[144,128]{1,0:T(1,128)}', space=vmem, size = 0x12000, scoped, tag = 'internal scratch']
  #allocation2 [shape = 'f32[8,1]{1,0:T(8,128)}', space=vmem, size = 0x1000, scoped, tag = 'scratch operand']
  #allocation3 [shape = 'f32[8,1]{1,0:T(8,128)}', space=vmem, size = 0x1000, scoped, tag = 'scratch operand']
  %s0 = inlined_call_operand.hbm [shape: bf16[8,128], index: 0, kind: input, shape index: {}]
  %s1 = inlined_call_operand.hbm [shape: bf16[8,128], index: 1, kind: input, shape index: {}]
  %s2 = inlined_call_operand.vmem [shape: f32[8,1], index: 2, kind: output, shape index: {}]
  %s3 = sld [smem:[#allocation0]]
  $region42: #{tpu_custom_call.1} parent=0
    _
  %s5 = ssub.s32 1, %s3
  %s6 = scalar_select 0, %s5, %s3
  $region1: #{tpu_custom_call.1} parent=0
    #allocation4 [shape = 'u8[2048]{0}', space=vmem, size = 0x800, scoped, tag = 'input window, operand 0, single buffered']
    #allocation5 [shape = 's32[1]{0}', space=sflag, size = 0x4, scoped, tag = 'scoped memory for tpu_custom_call.1']
    #allocation6 [shape = 'u8[2048]{0}', space=vmem, size = 0x800, scoped, tag = 'input window, operand 1, single buffered']
    #allocation7 [shape = 's32[1]{0}', space=sflag, size = 0x4, scoped, tag = 'scoped memory for tpu_custom_call.1']
    %7 = vsyncpa [#allocation5], 0
    %8 = vsyncpa [#allocation7], 0
    // Predicated region
    $region2: #{tpu_custom_call.1} parent=1 // pred_check
      _
    $region3: #{tpu_custom_call.1} parent=1 // pred_check_branch
      %10 = sbr.rel (0) target = $region5
    $region4: #{tpu_custom_call.1} parent=1 // pred_region
      %s12 = ssub.s32 64, 64
      %13 = vsyncadd [#allocation5], %s12
      %s15 = sshll.u32 [#allocation4], 4
      %s16 = int_to_ptr.vmem [resolvable:$true] %s15
      %18 = dma.hbm_to_vmem [thread:$0]  %s0, 64, %s16, [#allocation5]
    $region5: #{tpu_custom_call.1} parent=1 // pred_fallthru
      _
    // Predicated region
    $region6: #{tpu_custom_call.1} parent=1 // pred_check
      _
    $region7: #{tpu_custom_call.1} parent=1 // pred_check_branch
      %20 = sbr.rel (0) target = $region9
    $region8: #{tpu_custom_call.1} parent=1 // pred_region
      %s22 = ssub.s32 64, 64
      %23 = vsyncadd [#allocation7], %s22
      %s25 = sshll.u32 [#allocation6], 4
      %s26 = int_to_ptr.vmem [resolvable:$true] %s25
      %28 = dma.hbm_to_vmem [thread:$0]  %s1, 64, %s26, [#allocation7]
    $region9: #{tpu_custom_call.1} parent=1 // pred_fallthru
      _
    // Predicated region
    $region10: #{tpu_custom_call.1} parent=1 // pred_check
      _
    $region11: #{tpu_custom_call.1} parent=1 // pred_check_branch
      %30 = sbr.rel (0) target = $region13
    $region12: #{tpu_custom_call.1} parent=1 // pred_region
      %31 = dma.done [#allocation5], 64
    $region13: #{tpu_custom_call.1} parent=1 // pred_fallthru
      _
    // Predicated region
    $region14: #{tpu_custom_call.1} parent=1 // pred_check
      _
    $region15: #{tpu_custom_call.1} parent=1 // pred_check_branch
      %33 = sbr.rel (0) target = $region17
    $region16: #{tpu_custom_call.1} parent=1 // pred_region
      %34 = dma.done [#allocation7], 64
    $region17: #{tpu_custom_call.1} parent=1 // pred_fallthru
      _
    %p36 = scmp.eq.s32.totalorder 0, 0
    // Predicated region
    $region18: #{tpu_custom_call.1} parent=1 // pred_check
      %p37 = pneg %p36
    $region19: #{tpu_custom_call.1} parent=1 // pred_check_branch
      %39 = sbr.rel (%p37) target = $region21
    $region20: #{tpu_custom_call.1} parent=1 // pred_region
      %vm40 = vcmask 7168
      %41 = vst.msk [vmem:[#allocation2] sm:$0xff] %vm40, 0.0
      %42 = vst.msk [vmem:[#allocation3] sm:$0xff] %vm40, 0.0
    $region21: #{tpu_custom_call.1} parent=1 // pred_fallthru
      _
    %v43 = vld [vmem:[#allocation4] sm:$0xf]
    %v44 = vld [vmem:[#allocation6] sm:$0xf]
    %45 = vmatprep.subr.bf16.mxu0 0
    %46 = vmatpush1.bf16.xpose.msra.mxu0 %v44
    %47 = vmatprep.subr.bf16.mxu0 0
    %48 = vmatpush1.bf16.xpose.msra.mxu0 0
    %49 = vmatprep.subr.bf16.mxu0 0
    %50 = vmatpush1.bf16.xpose.msra.mxu0 0
    %51 = vmatprep.subr.bf16.mxu0 0
    %52 = vmatpush1.bf16.xpose.msra.mxu0 0
    %53 = vmatprep.subr.bf16.mxu0 0
    %54 = vmatpush1.bf16.xpose.msra.mxu0 0
    %55 = vmatprep.subr.bf16.mxu0 0
    %56 = vmatpush1.bf16.xpose.msra.mxu0 0
    %57 = vmatprep.subr.bf16.mxu0 0
    %58 = vmatpush1.bf16.xpose.msra.mxu0 0
    %59 = vmatprep.subr.bf16.mxu0 0
    %60 = vmatpush1.bf16.xpose.msra.mxu0 0
    %61 = vmatprep.subr.bf16.mxu0 0
    %62 = vmatpush1.bf16.xpose.msra.mxu0 0
    %63 = vmatprep.subr.bf16.mxu0 0
    %64 = vmatpush1.bf16.xpose.msra.mxu0 0
    %65 = vmatprep.subr.bf16.mxu0 0
    %66 = vmatpush1.bf16.xpose.msra.mxu0 0
    %67 = vmatprep.subr.bf16.mxu0 0
    %68 = vmatpush1.bf16.xpose.msra.mxu0 0
    %69 = vmatprep.subr.bf16.mxu0 0
    %70 = vmatpush1.bf16.xpose.msra.mxu0 0
    %71 = vmatprep.subr.bf16.mxu0 0
    %72 = vmatpush1.bf16.xpose.msra.mxu0 0
    %73 = vmatprep.subr.bf16.mxu0 0
    %74 = vmatpush1.bf16.xpose.msra.mxu0 0
    %75 = vmatprep.subr.bf16.mxu0 0
    %76 = vmatpush1.bf16.xpose.msra.mxu0 0
    %77 = vmatprep.mubr.bf16.mxu0 0
    %78 = vmatmul.mubr.bf16.gmra.mrb[0].mxu0 %v43
    %v79 = vpop.f32.mrb[0].mxu0
    %v80 = vadd.f32 0.0, %v79
    %v81 = vpop.f32.mrb[0].mxu0
    %v82 = vpop.f32.mrb[0].mxu0
    %v83 = vpop.f32.mrb[0].mxu0
    %84 = vdwg.mxu0
    %v85 = vsub.f32 %v80, 2.0
    %v86 = vmul.f32 %v85, 1.442695
    %v87 = vpow.pop %v86
    %s88 = smul.u32 0, 8
    %v89 = vlaneseq
    %v90 = vshrl.u32 %v89, 7
    %v91 = vstv %s88
    %v92 = vadd.s32 %v91, %v90
    %s93 = smul.u32 0, 8
    %v94 = vlaneseq
    %v95 = vand.u32 %v94, 127
    %v96 = vstv %s93
    %v97 = vadd.s32 %v96, %v95
    %v98 = vadd.s32 %v92, 4
    %vm99 = vcmp.lt.s32.totalorder %v98, 0
    %v100 = vsub.s32 0, %v98
    %v101 = vsel %vm99, %v100, %v98
    %v102 = vshrl.u32 %v101, 3
    %v103 = vand.u32 %v101, 7
    %v104 = vsub.s32 0, %v103
    %v105 = vsel %vm99, %v104, %v103
    %vm106 = vcmp.eq.s32.totalorder %v97, %v105
    %v107 = vld [vmem:[#allocation3] sm:$0xff]
    %v108 = vsel %vm106, %v80, 0.0
    %vm109 = vcmask 64512
    %v110 = vsel %vm109, %v108, 0.0
    %111 = vadd.xlane.f32.xlu0 %v110
    %v112 = vpop.xlane.xlu0 %111
    %v113 = vadd.f32 %v107, %v112
    %vm114 = vcmask 7168
    %115 = vst.msk [vmem:[#allocation3] sm:$0xff] %vm114, %v113
    %p116 = scmp.eq.s32.totalorder 0, 0
    // Predicated region
    $region22: #{tpu_custom_call.1} parent=1 // pred_check
      %p117 = pneg %p116
    $region23: #{tpu_custom_call.1} parent=1 // pred_check_branch
      %119 = sbr.rel (%p117) target = $region25
    $region24: #{tpu_custom_call.1} parent=1 // pred_region
      %v120 = vld [vmem:[#allocation2] sm:$0xff]
      %vm121 = vcmp.eq.s32.totalorder %v90, %v95
      %v122 = vsel %vm121, 0.0, %v87
      %v123 = vsel %vm109, %v122, 0.0
      %124 = vadd.xlane.f32.xlu0 %v123
      %v125 = vpop.xlane.xlu0 %124
      %v126 = vadd.f32 %v120, %v125
      %127 = vst.msk [vmem:[#allocation2] sm:$0xff] %vm114, %v126
    $region25: #{tpu_custom_call.1} parent=1 // pred_fallthru
      _
    %p128 = scmp.ne.s32.totalorder 0, 0
    // Predicated region
    $region26: #{tpu_custom_call.1} parent=1 // pred_check
      %p129 = pneg %p128
    $region27: #{tpu_custom_call.1} parent=1 // pred_check_branch
      %131 = sbr.rel (%p129) target = $region29
    $region28: #{tpu_custom_call.1} parent=1 // pred_region
      %v132 = vld [vmem:[#allocation2] sm:$0xff]
      %v133 = vsel %vm109, %v87, 0.0
      %134 = vadd.xlane.f32.xlu0 %v133
      %v135 = vpop.xlane.xlu0 %134
      %v136 = vadd.f32 %v132, %v135
      %137 = vst.msk [vmem:[#allocation2] sm:$0xff] %vm114, %v136
    $region29: #{tpu_custom_call.1} parent=1 // pred_fallthru
      _
    // Predicated region
    $region30: #{tpu_custom_call.1} parent=1 // pred_check
      %p138 = pneg %p36
    $region31: #{tpu_custom_call.1} parent=1 // pred_check_branch
      %140 = sbr.rel (%p138) target = $region33
    $region32: #{tpu_custom_call.1} parent=1 // pred_region
      %v141 = vld [vmem:[#allocation2] sm:$0xff]
      %v142 = vadd.f32 %v141, 1.3533529e-09
      %v143 = vlog2.pop %v142
      %v144 = vmul.f32 %v143, 0.6931472
      %v145 = vadd.f32 %v144, 2.0
      %v146 = vld [vmem:[#allocation3] sm:$0xff]
      %v147 = vsub.f32 %v145, %v146
      %148 = vst.msk [vmem:[%s2] sm:$0xff] %vm114, %v147
    $region33: #{tpu_custom_call.1} parent=1 // pred_fallthru
      _
    // Predicated region
    $region34: #{tpu_custom_call.1} parent=1 // pred_check
      _
    $region35: #{tpu_custom_call.1} parent=1 // pred_check_branch
      %150 = sbr.rel (0) target = $region37
    $region36: #{tpu_custom_call.1} parent=1 // pred_region
      _
    $region37: #{tpu_custom_call.1} parent=1 // pred_fallthru
      _
    // Predicated region
    $region38: #{tpu_custom_call.1} parent=1 // pred_check
      _
    $region39: #{tpu_custom_call.1} parent=1 // pred_check_branch
      %152 = sbr.rel (0) target = $region41
    $region40: #{tpu_custom_call.1} parent=1 // pred_region
      _
    $region41: #{tpu_custom_call.1} parent=1 // pred_fallthru
      _
    %153 = vsyncpa [#allocation5], 1
    %154 = vsyncpa [#allocation7], 1

</llo_original>
